<compile_context>
chip_gen: v7x
topology: tpu7x:2x2x1
jax: 0.10.0
libtpu: 0.0.40
codegen_flags: <defaults>
</compile_context>

<pallas_src>
import math

import jax
import jax.numpy as jnp
from jax.experimental import pallas as pl
from jax.experimental.pallas import tpu as pltpu


# ----------------------------------------------------------------------------
# Kernels
# ----------------------------------------------------------------------------

def _linear_relu_kernel(x_ref, w_ref, b_ref, o_ref):
    # relu(x @ w + b); w is already (K, N) so the MXU gets lane-contiguous
    # operands with no in-kernel transpose.
    acc = jnp.dot(x_ref[...], w_ref[...], preferred_element_type=jnp.float32)
    o_ref[...] = jnp.maximum(acc + b_ref[...], 0.0)


def _fc_cat_softmax_kernel(h_ref, w_ref, b_ref, o_ref):
    # h: (B, H), w: (A, H, Z), b: (A, 1, Z), o: (A, B, Z)
    # Fused final linear + per-action softmax (softmax along the lane axis).
    h = h_ref[...]
    for a in range(w_ref.shape[0]):            # static unroll, A is small
        logits = jnp.dot(h, w_ref[a], preferred_element_type=jnp.float32)
        logits = logits + b_ref[a]
        m = jnp.max(logits, axis=-1, keepdims=True)
        e = jnp.exp(logits - m)
        o_ref[a] = e / jnp.sum(e, axis=-1, keepdims=True)


# ----------------------------------------------------------------------------
# Pallas wrappers
# ----------------------------------------------------------------------------

def _round_up(n, m):
    return ((n + m - 1) // m) * m


def pallas_linear_relu(x, w, b, *, block_m=256):
    """relu(x @ w + b). x: (M, K), w: (K, N) pre-transposed, b: (N,)."""
    M, K = x.shape
    Kw, N = w.shape
    assert K == Kw
    if M <= block_m:
        tm, mp = M, M                      # single full-array block
    else:
        tm = block_m                       # multiple of 8
        mp = _round_up(M, tm)
        x = jnp.pad(x, ((0, mp - M), (0, 0)))

    out = pl.pallas_call(
        _linear_relu_kernel,
        out_shape=jax.ShapeDtypeStruct((mp, N), jnp.float32),
        grid=(mp // tm,),
        in_specs=[
            pl.BlockSpec((tm, K), lambda i: (i, 0)),
            pl.BlockSpec((K, N), lambda i: (0, 0)),
            pl.BlockSpec((1, N), lambda i: (0, 0)),
        ],
        out_specs=pl.BlockSpec((tm, N), lambda i: (i, 0)),
        compiler_params=pltpu.CompilerParams(
            dimension_semantics=("parallel",)),
    )(x.astype(jnp.float32), w.astype(jnp.float32),
      b.reshape(1, N).astype(jnp.float32))
    return out if mp == M else out[:M]


def _im2col(x, k, stride):
    """NHWC -> (B*OH*OW, k*k*C) patch matrix (wrapper-side layout plumbing)."""
    # TODO(synk): the strided window gather is done with plain XLA slicing in
    # the wrapper; an in-kernel strided-DMA gather would avoid materializing
    # the patch matrix in HBM.
    B, H, W, C = x.shape
    OH = (H - k) // stride + 1
    OW = (W - k) // stride + 1
    cols = []
    for i in range(k):
        for j in range(k):
            cols.append(x[:, i:i + stride * OH:stride,
                          j:j + stride * OW:stride, :])
    patches = jnp.concatenate(cols, axis=-1)            # (B, OH, OW, k*k*C)
    return patches.reshape(B * OH * OW, k * k * C), OH, OW


def _conv_relu(x, w, b, k, stride, block_m):
    """VALID conv (as in nn.Conv2d with no padding) + bias + ReLU."""
    B = x.shape[0]
    cout = w.shape[0]
    patches, OH, OW = _im2col(x, k, stride)
    # (Cout, Cin, KH, KW) -> (KH*KW*Cin, Cout), matching the im2col ordering.
    w_mat = jnp.transpose(w, (2, 3, 1, 0)).reshape(-1, cout)
    y = pallas_linear_relu(patches, w_mat, b, block_m=block_m)
    return y.reshape(B, OH, OW, cout)


def categorical_convnet_forward(x_nchw, params, n_actions, n_atoms, *,
                                block_m=256):
    B = x_nchw.shape[0]
    x = jnp.transpose(x_nchw, (0, 2, 3, 1)).astype(jnp.float32)     # NHWC

    y = _conv_relu(x, params["c1w"], params["c1b"], 8, 4, block_m)
    y = _conv_relu(y, params["c2w"], params["c2b"], 4, 2, block_m)
    y = _conv_relu(y, params["c3w"], params["c3b"], 3, 1, block_m)

    # Flatten in PyTorch's NCHW order so fc4's weight layout keeps its meaning.
    h = jnp.transpose(y, (0, 3, 1, 2)).reshape(B, -1)                # (B, 2304)
    h = pallas_linear_relu(h, params["f4w"].T, params["f4b"],
                           block_m=block_m)                          # (B, 512)

    # fc_categorical + per-action softmax, fused into one kernel.
    A, Z = n_actions, n_atoms
    hidden = h.shape[1]
    w_azh = params["fcw"].reshape(A, Z, hidden).transpose(0, 2, 1)   # (A, H, Z)
    b_az = params["fcb"].reshape(A, 1, Z)
    probs = pl.pallas_call(
        _fc_cat_softmax_kernel,
        out_shape=jax.ShapeDtypeStruct((A, B, Z), jnp.float32),
        grid=(1,),
        in_specs=[
            pl.BlockSpec((B, hidden), lambda i: (0, 0)),
            pl.BlockSpec((A, hidden, Z), lambda i: (0, 0, 0)),
            pl.BlockSpec((A, 1, Z), lambda i: (0, 0, 0)),
        ],
        out_specs=pl.BlockSpec((A, B, Z), lambda i: (0, 0, 0)),
        compiler_params=pltpu.CompilerParams(
            dimension_semantics=("arbitrary",)),
    )(h, w_azh.astype(jnp.float32), b_az.astype(jnp.float32))
    return jnp.transpose(probs, (1, 0, 2))                           # (B, A, Z)


# ----------------------------------------------------------------------------
# Pure-JAX reference (mirrors the PyTorch module exactly)
# ----------------------------------------------------------------------------

def reference_forward(x, params, n_actions, n_atoms):
    hp = jax.lax.Precision.HIGHEST

    def conv(z, w, b, s):
        out = jax.lax.conv_general_dilated(
            z, w, window_strides=(s, s), padding="VALID",
            dimension_numbers=("NCHW", "OIHW", "NCHW"), precision=hp)
        return out + b[None, :, None, None]

    y = jax.nn.relu(conv(x, params["c1w"], params["c1b"], 4))
    y = jax.nn.relu(conv(y, params["c2w"], params["c2b"], 2))
    y = jax.nn.relu(conv(y, params["c3w"], params["c3b"], 1))
    y = y.reshape(y.shape[0], -1)
    y = jax.nn.relu(jnp.dot(y, params["f4w"].T, precision=hp) + params["f4b"])
    y = jnp.dot(y, params["fcw"].T, precision=hp) + params["fcb"]
    y = y.reshape(-1, n_actions, n_atoms)
    return jax.nn.softmax(y, axis=2)


# ----------------------------------------------------------------------------
# Demo / correctness check
# ----------------------------------------------------------------------------

if __name__ == "__main__":
    in_channels = 4
    n_actions = 4
    n_atoms = 51
    batch = 2
    spatial = 76     # 76 -> 18 -> 8 -> 6, so flatten = 6*6*64 as fc4 expects

    key = jax.random.PRNGKey(0)
    ks = jax.random.split(key, 11)

    def w_init(k, shape, fan_in):
        return (1.0 / math.sqrt(fan_in)) * jax.random.normal(
            k, shape, dtype=jnp.float32)

    def b_init(k, n, fan_in):
        bound = 1.0 / math.sqrt(fan_in)
        return jax.random.uniform(k, (n,), dtype=jnp.float32,
                                  minval=-bound, maxval=bound)

    params = {
        "c1w": w_init(ks[0], (32, in_channels, 8, 8), in_channels * 64),
        "c1b": b_init(ks[1], 32, in_channels * 64),
        "c2w": w_init(ks[2], (64, 32, 4, 4), 32 * 16),
        "c2b": b_init(ks[3], 64, 32 * 16),
        "c3w": w_init(ks[4], (64, 64, 3, 3), 64 * 9),
        "c3b": b_init(ks[5], 64, 64 * 9),
        "f4w": w_init(ks[6], (512, 6 * 6 * 64), 6 * 6 * 64),
        "f4b": b_init(ks[7], 512, 6 * 6 * 64),
        "fcw": w_init(ks[8], (n_actions * n_atoms, 512), 512),
        "fcb": b_init(ks[9], n_actions * n_atoms, 512),
    }
    x = jax.random.uniform(ks[10], (batch, in_channels, spatial, spatial),
                           dtype=jnp.float32)

    out = categorical_convnet_forward(x, params, n_actions, n_atoms)
    out = jax.block_until_ready(out)

    ref = reference_forward(x, params, n_actions, n_atoms)
    assert out.shape == (batch, n_actions, n_atoms)
    assert bool(jnp.allclose(jnp.sum(out, axis=-1), 1.0, atol=1e-4))
    assert bool(jnp.allclose(out, ref, atol=1e-4, rtol=1e-3))

    print("KERNEL_OK")
</pallas_src>

<mosaic_0001>
module attributes {stable_mosaic.version = 11 : i64} {
  func.func @_linear_relu_kernel(%arg0: i32, %arg1: memref<256x256xf32, #tpu.memory_space<vmem>>, %arg2: memref<256x32xf32, #tpu.memory_space<vmem>>, %arg3: memref<1x32xf32, #tpu.memory_space<vmem>>, %arg4: memref<256x32xf32, #tpu.memory_space<vmem>>) attributes {dimension_semantics = [#tpu.dimension_semantics<parallel>], iteration_bounds = array<i64: 3>, scalar_prefetch = 0 : i64, scratch_operands = 0 : i64, tpu.core_type = #tpu.core_type<tc>, window_params = [{transform_indices = @transform_0, window_bounds = array<i64: 256, 256>}, {pipeline_mode = #tpu.pipeline_mode<synchronous>, transform_indices = @transform_1, window_bounds = array<i64: 256, 32>}, {pipeline_mode = #tpu.pipeline_mode<synchronous>, transform_indices = @transform_2, window_bounds = array<i64: 1, 32>}, {transform_indices = @transform_3, window_bounds = array<i64: 256, 32>}]} {
    %c0 = arith.constant 0 : index
    %c0_0 = arith.constant 0 : index
    %0 = vector.load %arg1[%c0, %c0_0] : memref<256x256xf32, #tpu.memory_space<vmem>>, vector<256x256xf32>
    %c0_1 = arith.constant 0 : index
    %c0_2 = arith.constant 0 : index
    %1 = vector.load %arg2[%c0_1, %c0_2] : memref<256x32xf32, #tpu.memory_space<vmem>>, vector<256x32xf32>
    %cst = arith.constant dense<0.000000e+00> : vector<256x32xf32>
    %2 = tpu.matmul %0, %1, %cst {dimension_numbers = #tpu.dot_dimension_numbers<[1], [0], [0], [1], [0, 0, 1, 1], [], []>} : vector<256x256xf32>, vector<256x32xf32>, vector<256x32xf32> -> vector<256x32xf32>
    %c0_3 = arith.constant 0 : index
    %c0_4 = arith.constant 0 : index
    %3 = vector.load %arg3[%c0_3, %c0_4] : memref<1x32xf32, #tpu.memory_space<vmem>>, vector<1x32xf32>
    %4 = vector.broadcast %3 : vector<1x32xf32> to vector<256x32xf32>
    %5 = arith.addf %2, %4 : vector<256x32xf32>
    %cst_5 = arith.constant 0.000000e+00 : f32
    %6 = vector.broadcast %cst_5 : f32 to vector<256x32xf32>
    %7 = arith.maximumf %5, %6 : vector<256x32xf32>
    %c0_6 = arith.constant 0 : index
    %c0_7 = arith.constant 0 : index
    %8 = vector.load %arg4[%c0_6, %c0_7] : memref<256x32xf32, #tpu.memory_space<vmem>>, vector<256x32xf32>
    tpu.vector_store %arg4[%c0_6, %c0_7], %7 {strides = array<i32>} : memref<256x32xf32, #tpu.memory_space<vmem>>, vector<256x32xf32>,
    return
  }
  func.func @transform_0(%arg0: i32) -> (i32, i32) {
    %c0_i32 = arith.constant 0 : i32
    %c0_i32_0 = arith.constant 0 : i32
    return %arg0, %c0_i32 : i32, i32
  }
  func.func @transform_1(%arg0: i32) -> (i32, i32) {
    %c0_i32 = arith.constant 0 : i32
    %c0_i32_0 = arith.constant 0 : i32
    %c0_i32_1 = arith.constant 0 : i32
    return %c0_i32, %c0_i32_0 : i32, i32
  }
  func.func @transform_2(%arg0: i32) -> (i32, i32) {
    %c0_i32 = arith.constant 0 : i32
    %c0_i32_0 = arith.constant 0 : i32
    %c0_i32_1 = arith.constant 0 : i32
    return %c0_i32, %c0_i32_0 : i32, i32
  }
  func.func @transform_3(%arg0: i32) -> (i32, i32) {
    %c0_i32 = arith.constant 0 : i32
    %c0_i32_0 = arith.constant 0 : i32
    return %arg0, %c0_i32 : i32, i32
  }
}

</mosaic_0001>

<llo_original>
// kernel: tpu_custom_call.1
$region0: #{tpu_custom_call.1}
  #allocation0 [shape = 'u32[]', space=smem, size = 0x4, offset = 0x4, fixed_abs, tag = 'smem constant byte address 0x4 - core index']
  #allocation1 [shape = 'u32[144,128]{1,0:T(1,128)}', space=vmem, size = 0x12000, scoped, tag = 'internal scratch']
  %s0 = inlined_call_operand.hbm [shape: f32[768,256], index: 0, kind: input, shape index: {}]
  %s1 = inlined_call_operand.vmem [shape: f32[256,32], index: 1, kind: input, shape index: {}]
  %s2 = inlined_call_operand.vmem [shape: f32[1,32], index: 2, kind: input, shape index: {}]
  %s3 = inlined_call_operand.vmem [shape: f32[768,32], index: 3, kind: output, shape index: {}]
  %s4 = sld [smem:[#allocation0]]
  $region49: #{tpu_custom_call.1} parent=0
    _
  %s6 = ssub.s32 1, %s4
  %s7 = scalar_select 0, %s6, %s4
  $region1: #{tpu_custom_call.1} parent=0
    #allocation2 [shape = 'u8[524288]{0}', space=vmem, size = 0x80000, scoped, tag = 'input window, operand 0']
    #allocation3 [shape = 's32[2]{0}', space=sflag, size = 0x8, scoped, tag = 'scoped memory for tpu_custom_call.1']
    %8 = vsyncpa [#allocation3], 0
    %s9 = scalar_lea.sflag [#allocation3], 1
    %10 = vsyncpa %s9, 0
    loop: start=0, step=1, limit=5
    $region2: #{tpu_custom_call.1} parent=1 // loop_pre_header
      _
    $region3: #{tpu_custom_call.1} parent=1 // loop_header
      %s12 = sphi 0, %s16
      %p13 = scmp.ge.s32.totalorder %s12, 5
      %s22 = sphi 0, %s24
      %s25 = sphi 0, %s22
      %s26 = sphi 0, %s25
      %s42 = sphi 0, %s26
      %s46 = sphi 0, %s46
      %s48 = sphi 0, %s46
      %s49 = sphi 0, %s48
      %s63 = sphi 0, %s49
      %s67 = sphi 0, %s67
      %s69 = sphi 0, %s67
      %s70 = sphi 0, %s69
      %s84 = sphi 0, %s70
      %s90 = sphi 0, %s92
      %s93 = sphi 0, %s90
      %s94 = sphi 0, %s93
      %s110 = sphi 0, %s94
    $region4: #{tpu_custom_call.1} parent=1 // loop_header_branch
      %15 = sbr.rel (%p13) target = $region8
    $region5: #{tpu_custom_call.1} parent=1 // loop_body
      %s17 = ssub.s32 %s12, 1
      %s18 = ssub.s32 %s12, 2
      %s19 = sadd.s32 %s12, 1
      %s20 = ssub.s32 %s12, %s19
      %p21 = scmp.eq.s32.totalorder %s20, 0
      %s23 = sadd.s32 %s22, 1
      %s24 = scalar_select %p21, %s22, %s23
      %p27 = pneg %p21
      %p28 = scmp.eq.s32.totalorder %s12, 2
      %p29 = por %p27, %p28
      %p30 = scmp.ne.s32.totalorder %s22, %s25
      %p31 = scmp.eq.s32.totalorder %s12, 0
      %p32 = por %p30, %p31
      %p33 = scmp.ne.s32.totalorder %s22, %s25
      %p34 = scmp.eq.s32.totalorder %s17, 2
      %p35 = por %p33, %p34
      %p36 = scmp.ne.s32.totalorder %s25, %s26
      %p37 = scmp.eq.s32.totalorder %s17, 0
      %p38 = por %p36, %p37
      %p39 = scmp.ne.s32.totalorder %s25, %s26
      %p40 = scmp.eq.s32.totalorder %s18, 2
      %p41 = por %p39, %p40
      %p43 = scmp.ne.s32.totalorder %s26, %s42
      %p44 = scmp.eq.s32.totalorder %s18, 0
      %p45 = por %p43, %p44
      %s47 = sadd.s32 %s46, 1
      %p50 = scmp.eq.s32.totalorder %s12, 2
      %p51 = scmp.ne.s32.totalorder %s46, %s48
      %p52 = scmp.eq.s32.totalorder %s12, 0
      %p53 = por %p51, %p52
      %p54 = scmp.ne.s32.totalorder %s46, %s48
      %p55 = scmp.eq.s32.totalorder %s17, 2
      %p56 = por %p54, %p55
      %p57 = scmp.ne.s32.totalorder %s48, %s49
      %p58 = scmp.eq.s32.totalorder %s17, 0
      %p59 = por %p57, %p58
      %p60 = scmp.ne.s32.totalorder %s48, %s49
      %p61 = scmp.eq.s32.totalorder %s18, 2
      %p62 = por %p60, %p61
      %p64 = scmp.ne.s32.totalorder %s49, %s63
      %p65 = scmp.eq.s32.totalorder %s18, 0
      %p66 = por %p64, %p65
      %s68 = sadd.s32 %s67, 1
      %p71 = scmp.eq.s32.totalorder %s12, 2
      %p72 = scmp.ne.s32.totalorder %s67, %s69
      %p73 = scmp.eq.s32.totalorder %s12, 0
      %p74 = por %p72, %p73
      %p75 = scmp.ne.s32.totalorder %s67, %s69
      %p76 = scmp.eq.s32.totalorder %s17, 2
      %p77 = por %p75, %p76
      %p78 = scmp.ne.s32.totalorder %s69, %s70
      %p79 = scmp.eq.s32.totalorder %s17, 0
      %p80 = por %p78, %p79
      %p81 = scmp.ne.s32.totalorder %s69, %s70
      %p82 = scmp.eq.s32.totalorder %s18, 2
      %p83 = por %p81, %p82
      %p85 = scmp.ne.s32.totalorder %s70, %s84
      %p86 = scmp.eq.s32.totalorder %s18, 0
      %p87 = por %p85, %p86
      %s88 = ssub.s32 %s12, %s19
      %p89 = scmp.eq.s32.totalorder %s88, 0
      %s91 = sadd.s32 %s90, 1
      %s92 = scalar_select %p89, %s90, %s91
      %p95 = pneg %p89
      %p96 = scmp.eq.s32.totalorder %s12, 2
      %p97 = por %p95, %p96
      %p98 = scmp.ne.s32.totalorder %s90, %s93
      %p99 = scmp.eq.s32.totalorder %s12, 0
      %p100 = por %p98, %p99
      %p101 = scmp.ne.s32.totalorder %s90, %s93
      %p102 = scmp.eq.s32.totalorder %s17, 2
      %p103 = por %p101, %p102
      %p104 = scmp.ne.s32.totalorder %s93, %s94
      %p105 = scmp.eq.s32.totalorder %s17, 0
      %p106 = por %p104, %p105
      %p107 = scmp.ne.s32.totalorder %s93, %s94
      %p108 = scmp.eq.s32.totalorder %s18, 2
      %p109 = por %p107, %p108
      %p111 = scmp.ne.s32.totalorder %s94, %s110
      %p112 = scmp.eq.s32.totalorder %s18, 0
      %p113 = por %p111, %p112
      %p114 = scmp.le.s32.totalorder 1, %s12
      %p115 = scmp.lt.s32.totalorder %s12, 4
      %p116 = pnand %p114, %p115
      %p117 = pneg %p116
      // Predicated region
      $region9: #{tpu_custom_call.1} parent=5 // pred_check
        _
      $region10: #{tpu_custom_call.1} parent=5 // pred_check_branch
        %119 = sbr.rel (%p116) target = $region12
      $region11: #{tpu_custom_call.1} parent=5 // pred_region
        %s120 = ssub.s32 %s12, 1
        // Predicated region
        $region13: #{tpu_custom_call.1} parent=11 // pred_check
          %p121 = pneg %p59
        $region14: #{tpu_custom_call.1} parent=11 // pred_check_branch
          %123 = sbr.rel (%p121) target = $region16
        $region15: #{tpu_custom_call.1} parent=11 // pred_region
          _
        $region16: #{tpu_custom_call.1} parent=11 // pred_fallthru
          _
        // Predicated region
        $region17: #{tpu_custom_call.1} parent=11 // pred_check
          %p124 = pneg %p80
        $region18: #{tpu_custom_call.1} parent=11 // pred_check_branch
          %126 = sbr.rel (%p124) target = $region20
        $region19: #{tpu_custom_call.1} parent=11 // pred_region
          _
        $region20: #{tpu_custom_call.1} parent=11 // pred_fallthru
          _
      $region12: #{tpu_custom_call.1} parent=5 // pred_fallthru
        _
      %p127 = scmp.lt.s32.totalorder %s12, 3
      // Predicated region
      $region21: #{tpu_custom_call.1} parent=5 // pred_check
        %p128 = pneg %p127
      $region22: #{tpu_custom_call.1} parent=5 // pred_check_branch
        %130 = sbr.rel (%p128) target = $region24
      $region23: #{tpu_custom_call.1} parent=5 // pred_region
        // Predicated region
        $region25: #{tpu_custom_call.1} parent=23 // pred_check
          %p131 = pneg %p32
        $region26: #{tpu_custom_call.1} parent=23 // pred_check_branch
          %133 = sbr.rel (%p131) target = $region28
        $region27: #{tpu_custom_call.1} parent=23 // pred_region
          %s134 = sand.u32 %s22, 1
          %s135 = scalar_lea.sflag [#allocation3], %s134
          %s136 = sand.u32 %s22, 1
          %s137 = smul.addr %s136, 512
          %s138 = scalar_lea.vmem [#allocation2], %s137
          %s139 = smul.u32 32, %s12
          %s141 = ssub.s32 8192, 8192
          %142 = vsyncadd %s135, %s141
          %s143 = smul.addr %s139, 2
          %s144 = smul.addr %s143, 128
          %s145 = scalar_lea.hbm %s0, %s144
          %s146 = sshll.u32 %s138, 4
          %s147 = int_to_ptr.vmem [resolvable:$true] %s146
          %152 = dma.hbm_to_vmem [thread:$0]  %s145, 8192, %s147, %s135, 256, 256, 16
        $region28: #{tpu_custom_call.1} parent=23 // pred_fallthru
          _
      $region24: #{tpu_custom_call.1} parent=5 // pred_fallthru
        _
      %p153 = scmp.le.s32.totalorder 1, %s12
      %p154 = scmp.lt.s32.totalorder %s12, 4
      %p155 = pnand %p153, %p154
      %p156 = pneg %p155
      // Predicated region
      $region29: #{tpu_custom_call.1} parent=5 // pred_check
        _
      $region30: #{tpu_custom_call.1} parent=5 // pred_check_branch
        %158 = sbr.rel (%p155) target = $region32
      $region31: #{tpu_custom_call.1} parent=5 // pred_region
        %s159 = ssub.s32 %s12, 1
        %s160 = sand.u32 %s25, 1
        %s161 = scalar_lea.sflag [#allocation3], %s160
        %s162 = sand.u32 %s25, 1
        %s163 = smul.addr %s162, 512
        %s164 = scalar_lea.vmem [#allocation2], %s163
        // Predicated region
        $region33: #{tpu_custom_call.1} parent=31 // pred_check
          %p165 = pneg %p38
        $region34: #{tpu_custom_call.1} parent=31 // pred_check_branch
          %167 = sbr.rel (%p165) target = $region36
        $region35: #{tpu_custom_call.1} parent=31 // pred_region
          %168 = dma.done %s161, 8192
        $region36: #{tpu_custom_call.1} parent=31 // pred_fallthru
          _
        %s169 = sand.u32 %s25, 1
        %s170 = scalar_lea.sflag [#allocation3], %s169
        %s171 = sand.u32 %s25, 1
        %s172 = smul.addr %s171, 512
        %s173 = scalar_lea.vmem [#allocation2], %s172
        %p174 = pneg %p38
        %p175 = pneg %p35
        %p176 = pneg %p59
        %p177 = pneg %p56
        %p178 = pneg %p80
        %p179 = pneg %p77
        %p180 = pneg %p106
        %p181 = pneg %p103
        %s182 = smul.u32 32, %s17
        %p183 = scmp.lt.s32.totalorder %s182, 95
        %s184 = scalar_select %p183, %s182, 95
        %s185 = smul.addr %s184, 8
        %s186 = scalar_lea.vmem %s3, %s185
        %s187 = smul.u32 32, %s17
        %s188 = smul.u32 32, %s17
        %p189 = scmp.lt.s32.totalorder %s188, 95
        %s190 = scalar_select %p189, %s188, 95
        %s191 = smul.addr %s190, 8
        %s192 = scalar_lea.vmem %s3, %s191
        %s193 = smul.u32 32, %s17
        %v194 = vld [vmem:[%s164] sm:$0xff]
        %v195 = vld [vmem:[%s164 + $0x8] sm:$0xff]
        %v196 = vld [vmem:[%s164 + $0x10] sm:$0xff]
        %v197 = vld [vmem:[%s164 + $0x18] sm:$0xff]
        %v198 = vld [vmem:[%s164 + $0x20] sm:$0xff]
        %v199 = vld [vmem:[%s164 + $0x28] sm:$0xff]
        %v200 = vld [vmem:[%s164 + $0x30] sm:$0xff]
        %v201 = vld [vmem:[%s164 + $0x38] sm:$0xff]
        %v202 = vld [vmem:[%s164 + $0x40] sm:$0xff]
        %v203 = vld [vmem:[%s164 + $0x48] sm:$0xff]
        %v204 = vld [vmem:[%s164 + $0x50] sm:$0xff]
        %v205 = vld [vmem:[%s164 + $0x58] sm:$0xff]
        %v206 = vld [vmem:[%s164 + $0x60] sm:$0xff]
        %v207 = vld [vmem:[%s164 + $0x68] sm:$0xff]
        %v208 = vld [vmem:[%s164 + $0x70] sm:$0xff]
        %v209 = vld [vmem:[%s164 + $0x78] sm:$0xff]
        %v210 = vld [vmem:[%s164 + $0x80] sm:$0xff]
        %v211 = vld [vmem:[%s164 + $0x88] sm:$0xff]
        %v212 = vld [vmem:[%s164 + $0x90] sm:$0xff]
        %v213 = vld [vmem:[%s164 + $0x98] sm:$0xff]
        %v214 = vld [vmem:[%s164 + $0xa0] sm:$0xff]
        %v215 = vld [vmem:[%s164 + $0xa8] sm:$0xff]
        %v216 = vld [vmem:[%s164 + $0xb0] sm:$0xff]
        %v217 = vld [vmem:[%s164 + $0xb8] sm:$0xff]
        %v218 = vld [vmem:[%s164 + $0xc0] sm:$0xff]
        %v219 = vld [vmem:[%s164 + $0xc8] sm:$0xff]
        %v220 = vld [vmem:[%s164 + $0xd0] sm:$0xff]
        %v221 = vld [vmem:[%s164 + $0xd8] sm:$0xff]
        %v222 = vld [vmem:[%s164 + $0xe0] sm:$0xff]
        %v223 = vld [vmem:[%s164 + $0xe8] sm:$0xff]
        %v224 = vld [vmem:[%s164 + $0xf0] sm:$0xff]
        %v225 = vld [vmem:[%s164 + $0xf8] sm:$0xff]
        %v226 = vld [vmem:[%s164 + $0x100] sm:$0xff]
        %v227 = vld [vmem:[%s164 + $0x108] sm:$0xff]
        %v228 = vld [vmem:[%s164 + $0x110] sm:$0xff]
        %v229 = vld [vmem:[%s164 + $0x118] sm:$0xff]
        %v230 = vld [vmem:[%s164 + $0x120] sm:$0xff]
        %v231 = vld [vmem:[%s164 + $0x128] sm:$0xff]
        %v232 = vld [vmem:[%s164 + $0x130] sm:$0xff]
        %v233 = vld [vmem:[%s164 + $0x138] sm:$0xff]
        %v234 = vld [vmem:[%s164 + $0x140] sm:$0xff]
        %v235 = vld [vmem:[%s164 + $0x148] sm:$0xff]
        %v236 = vld [vmem:[%s164 + $0x150] sm:$0xff]
        %v237 = vld [vmem:[%s164 + $0x158] sm:$0xff]
        %v238 = vld [vmem:[%s164 + $0x160] sm:$0xff]
        %v239 = vld [vmem:[%s164 + $0x168] sm:$0xff]
        %v240 = vld [vmem:[%s164 + $0x170] sm:$0xff]
        %v241 = vld [vmem:[%s164 + $0x178] sm:$0xff]
        %v242 = vld [vmem:[%s164 + $0x180] sm:$0xff]
        %v243 = vld [vmem:[%s164 + $0x188] sm:$0xff]
        %v244 = vld [vmem:[%s164 + $0x190] sm:$0xff]
        %v245 = vld [vmem:[%s164 + $0x198] sm:$0xff]
        %v246 = vld [vmem:[%s164 + $0x1a0] sm:$0xff]
        %v247 = vld [vmem:[%s164 + $0x1a8] sm:$0xff]
        %v248 = vld [vmem:[%s164 + $0x1b0] sm:$0xff]
        %v249 = vld [vmem:[%s164 + $0x1b8] sm:$0xff]
        %v250 = vld [vmem:[%s164 + $0x1c0] sm:$0xff]
        %v251 = vld [vmem:[%s164 + $0x1c8] sm:$0xff]
        %v252 = vld [vmem:[%s164 + $0x1d0] sm:$0xff]
        %v253 = vld [vmem:[%s164 + $0x1d8] sm:$0xff]
        %v254 = vld [vmem:[%s164 + $0x1e0] sm:$0xff]
        %v255 = vld [vmem:[%s164 + $0x1e8] sm:$0xff]
        %v256 = vld [vmem:[%s164 + $0x1f0] sm:$0xff]
        %v257 = vld [vmem:[%s164 + $0x1f8] sm:$0xff]
        %v258 = vld [vmem:[%s1] sm:$0xff]
        %v259 = vld [vmem:[%s1 + $0x8] sm:$0xff]
        %v260 = vld [vmem:[%s1 + $0x10] sm:$0xff]
        %v261 = vld [vmem:[%s1 + $0x18] sm:$0xff]
        %v262 = vld [vmem:[%s1 + $0x20] sm:$0xff]
        %v263 = vld [vmem:[%s1 + $0x28] sm:$0xff]
        %v264 = vld [vmem:[%s1 + $0x30] sm:$0xff]
        %v265 = vld [vmem:[%s1 + $0x38] sm:$0xff]
        %v266 = vld [vmem:[%s1 + $0x40] sm:$0xff]
        %v267 = vld [vmem:[%s1 + $0x48] sm:$0xff]
        %v268 = vld [vmem:[%s1 + $0x50] sm:$0xff]
        %v269 = vld [vmem:[%s1 + $0x58] sm:$0xff]
        %v270 = vld [vmem:[%s1 + $0x60] sm:$0xff]
        %v271 = vld [vmem:[%s1 + $0x68] sm:$0xff]
        %v272 = vld [vmem:[%s1 + $0x70] sm:$0xff]
        %v273 = vld [vmem:[%s1 + $0x78] sm:$0xff]
        %v274 = vld [vmem:[%s1 + $0x80] sm:$0xff]
        %v275 = vld [vmem:[%s1 + $0x88] sm:$0xff]
        %v276 = vld [vmem:[%s1 + $0x90] sm:$0xff]
        %v277 = vld [vmem:[%s1 + $0x98] sm:$0xff]
        %v278 = vld [vmem:[%s1 + $0xa0] sm:$0xff]
        %v279 = vld [vmem:[%s1 + $0xa8] sm:$0xff]
        %v280 = vld [vmem:[%s1 + $0xb0] sm:$0xff]
        %v281 = vld [vmem:[%s1 + $0xb8] sm:$0xff]
        %v282 = vld [vmem:[%s1 + $0xc0] sm:$0xff]
        %v283 = vld [vmem:[%s1 + $0xc8] sm:$0xff]
        %v284 = vld [vmem:[%s1 + $0xd0] sm:$0xff]
        %v285 = vld [vmem:[%s1 + $0xd8] sm:$0xff]
        %v286 = vld [vmem:[%s1 + $0xe0] sm:$0xff]
        %v287 = vld [vmem:[%s1 + $0xe8] sm:$0xff]
        %v288 = vld [vmem:[%s1 + $0xf0] sm:$0xff]
        %v289 = vld [vmem:[%s1 + $0xf8] sm:$0xff]
        %v290 = vld [vmem:[%s2] sm:$0x1]
        %v292 = vlaneseq
        %v293 = vshrl.u32 %v292, 7
        %v294 = vsub.s32 0, %v293
        %v295 = vrot.slane %v290, %v294
        %297 = vmatprep.subr.mxu0 0.0
        %298 = vmatpush1.msra.mxu0 %v258
        %299 = vmatprep.subr.mxu0 0.0
        %300 = vmatpush1.msra.mxu0 %v259
        %301 = vmatprep.subr.mxu0 0.0
        %302 = vmatpush1.msra.mxu0 %v260
        %303 = vmatprep.subr.mxu0 0.0
        %304 = vmatpush1.msra.mxu0 %v261
        %305 = vmatprep.subr.mxu0 0.0
        %306 = vmatpush1.msra.mxu0 %v262
        %307 = vmatprep.subr.mxu0 0.0
        %308 = vmatpush1.msra.mxu0 %v263
        %309 = vmatprep.subr.mxu0 0.0
        %310 = vmatpush1.msra.mxu0 %v264
        %311 = vmatprep.subr.mxu0 0.0
        %312 = vmatpush1.msra.mxu0 %v265
        %313 = vmatprep.subr.mxu0 0.0
        %314 = vmatpush1.msra.mxu0 %v266
        %315 = vmatprep.subr.mxu0 0.0
        %316 = vmatpush1.msra.mxu0 %v267
        %317 = vmatprep.subr.mxu0 0.0
        %318 = vmatpush1.msra.mxu0 %v268
        %319 = vmatprep.subr.mxu0 0.0
        %320 = vmatpush1.msra.mxu0 %v269
        %321 = vmatprep.subr.mxu0 0.0
        %322 = vmatpush1.msra.mxu0 %v270
        %323 = vmatprep.subr.mxu0 0.0
        %324 = vmatpush1.msra.mxu0 %v271
        %325 = vmatprep.subr.mxu0 0.0
        %326 = vmatpush1.msra.mxu0 %v272
        %327 = vmatprep.subr.mxu0 0.0
        %328 = vmatpush1.msra.mxu0 %v273
        %329 = vmatprep.subr.mxu0 0.0
        %330 = vmatpush1.msra.mxu0 %v274
        %331 = vmatprep.subr.mxu0 0.0
        %332 = vmatpush1.msra.mxu0 %v275
        %333 = vmatprep.subr.mxu0 0.0
        %334 = vmatpush1.msra.mxu0 %v276
        %335 = vmatprep.subr.mxu0 0.0
        %336 = vmatpush1.msra.mxu0 %v277
        %337 = vmatprep.subr.mxu0 0.0
        %338 = vmatpush1.msra.mxu0 %v278
        %339 = vmatprep.subr.mxu0 0.0
        %340 = vmatpush1.msra.mxu0 %v279
        %341 = vmatprep.subr.mxu0 0.0
        %342 = vmatpush1.msra.mxu0 %v280
        %343 = vmatprep.subr.mxu0 0.0
        %344 = vmatpush1.msra.mxu0 %v281
        %345 = vmatprep.subr.mxu0 0.0
        %346 = vmatpush1.msra.mxu0 %v282
        %347 = vmatprep.subr.mxu0 0.0
        %348 = vmatpush1.msra.mxu0 %v283
        %349 = vmatprep.subr.mxu0 0.0
        %350 = vmatpush1.msra.mxu0 %v284
        %351 = vmatprep.subr.mxu0 0.0
        %352 = vmatpush1.msra.mxu0 %v285
        %353 = vmatprep.subr.mxu0 0.0
        %354 = vmatpush1.msra.mxu0 %v286
        %355 = vmatprep.subr.mxu0 0.0
        %356 = vmatpush1.msra.mxu0 %v287
        %357 = vmatprep.subr.mxu0 0.0
        %358 = vmatpush1.msra.mxu0 %v288
        %359 = vmatprep.subr.mxu0 0.0
        %360 = vmatpush1.msra.mxu0 %v289
        %361 = vmatprep.mubr.f32.mxu0 %v195
        %362 = vmatmul.mubr.f32.gmra.mrb[0].mxu0 %v194
        %v363 = vpop.f32.mrb[0].mxu0
        %v364 = vadd.f32 %v295, %v363
        %v365 = vpop.f32.mrb[0].mxu0
        %366 = vmatprep.mubr.f32.mxu0 %v197
        %367 = vmatmul.mubr.f32.gmra.mrb[0].mxu0 %v196
        %v368 = vpop.f32.mrb[0].mxu0
        %v369 = vadd.f32 %v295, %v368
        %v370 = vpop.f32.mrb[0].mxu0
        %371 = vmatprep.mubr.f32.mxu0 %v199
        %372 = vmatmul.mubr.f32.gmra.mrb[0].mxu0 %v198
        %v373 = vpop.f32.mrb[0].mxu0
        %v374 = vadd.f32 %v295, %v373
        %v375 = vpop.f32.mrb[0].mxu0
        %376 = vmatprep.mubr.f32.mxu0 %v201
        %377 = vmatmul.mubr.f32.gmra.mrb[0].mxu0 %v200
        %v378 = vpop.f32.mrb[0].mxu0
        %v379 = vadd.f32 %v295, %v378
        %v380 = vpop.f32.mrb[0].mxu0
        %381 = vmatprep.mubr.f32.mxu0 %v203
        %382 = vmatmul.mubr.f32.gmra.mrb[0].mxu0 %v202
        %v383 = vpop.f32.mrb[0].mxu0
        %v384 = vadd.f32 %v295, %v383
        %v385 = vpop.f32.mrb[0].mxu0
        %386 = vmatprep.mubr.f32.mxu0 %v205
        %387 = vmatmul.mubr.f32.gmra.mrb[0].mxu0 %v204
        %v388 = vpop.f32.mrb[0].mxu0
        %v389 = vadd.f32 %v295, %v388
        %v390 = vpop.f32.mrb[0].mxu0
        %391 = vmatprep.mubr.f32.mxu0 %v207
        %392 = vmatmul.mubr.f32.gmra.mrb[0].mxu0 %v206
        %v393 = vpop.f32.mrb[0].mxu0
        %v394 = vadd.f32 %v295, %v393
        %v395 = vpop.f32.mrb[0].mxu0
        %396 = vmatprep.mubr.f32.mxu0 %v209
        %397 = vmatmul.mubr.f32.gmra.mrb[0].mxu0 %v208
        %v398 = vpop.f32.mrb[0].mxu0
        %v399 = vadd.f32 %v295, %v398
        %v400 = vpop.f32.mrb[0].mxu0
        %401 = vmatprep.mubr.f32.mxu0 %v211
        %402 = vmatmul.mubr.f32.gmra.mrb[0].mxu0 %v210
        %v403 = vpop.f32.mrb[0].mxu0
        %v404 = vadd.f32 %v295, %v403
        %v405 = vpop.f32.mrb[0].mxu0
        %406 = vmatprep.mubr.f32.mxu0 %v213
        %407 = vmatmul.mubr.f32.gmra.mrb[0].mxu0 %v212
        %v408 = vpop.f32.mrb[0].mxu0
        %v409 = vadd.f32 %v295, %v408
        %v410 = vpop.f32.mrb[0].mxu0
        %411 = vmatprep.mubr.f32.mxu0 %v215
        %412 = vmatmul.mubr.f32.gmra.mrb[0].mxu0 %v214
        %v413 = vpop.f32.mrb[0].mxu0
        %v414 = vadd.f32 %v295, %v413
        %v415 = vpop.f32.mrb[0].mxu0
        %416 = vmatprep.mubr.f32.mxu0 %v217
        %417 = vmatmul.mubr.f32.gmra.mrb[0].mxu0 %v216
        %v418 = vpop.f32.mrb[0].mxu0
        %v419 = vadd.f32 %v295, %v418
        %v420 = vpop.f32.mrb[0].mxu0
        %421 = vmatprep.mubr.f32.mxu0 %v219
        %422 = vmatmul.mubr.f32.gmra.mrb[0].mxu0 %v218
        %v423 = vpop.f32.mrb[0].mxu0
        %v424 = vadd.f32 %v295, %v423
        %v425 = vpop.f32.mrb[0].mxu0
        %426 = vmatprep.mubr.f32.mxu0 %v221
        %427 = vmatmul.mubr.f32.gmra.mrb[0].mxu0 %v220
        %v428 = vpop.f32.mrb[0].mxu0
        %v429 = vadd.f32 %v295, %v428
        %v430 = vpop.f32.mrb[0].mxu0
        %431 = vmatprep.mubr.f32.mxu0 %v223
        %432 = vmatmul.mubr.f32.gmra.mrb[0].mxu0 %v222
        %v433 = vpop.f32.mrb[0].mxu0
        %v434 = vadd.f32 %v295, %v433
        %v435 = vpop.f32.mrb[0].mxu0
        %436 = vmatprep.mubr.f32.mxu0 %v225
        %437 = vmatmul.mubr.f32.gmra.mrb[0].mxu0 %v224
        %v438 = vpop.f32.mrb[0].mxu0
        %v439 = vadd.f32 %v295, %v438
        %v440 = vpop.f32.mrb[0].mxu0
        %441 = vmatprep.mubr.f32.mxu0 %v227
        %442 = vmatmul.mubr.f32.gmra.mrb[0].mxu0 %v226
        %v443 = vpop.f32.mrb[0].mxu0
        %v444 = vadd.f32 %v295, %v443
        %v445 = vpop.f32.mrb[0].mxu0
        %446 = vmatprep.mubr.f32.mxu0 %v229
        %447 = vmatmul.mubr.f32.gmra.mrb[0].mxu0 %v228
        %v448 = vpop.f32.mrb[0].mxu0
        %v449 = vadd.f32 %v295, %v448
        %v450 = vpop.f32.mrb[0].mxu0
        %451 = vmatprep.mubr.f32.mxu0 %v231
        %452 = vmatmul.mubr.f32.gmra.mrb[0].mxu0 %v230
        %v453 = vpop.f32.mrb[0].mxu0
        %v454 = vadd.f32 %v295, %v453
        %v455 = vpop.f32.mrb[0].mxu0
        %456 = vmatprep.mubr.f32.mxu0 %v233
        %457 = vmatmul.mubr.f32.gmra.mrb[0].mxu0 %v232
        %v458 = vpop.f32.mrb[0].mxu0
        %v459 = vadd.f32 %v295, %v458
        %v460 = vpop.f32.mrb[0].mxu0
        %461 = vmatprep.mubr.f32.mxu0 %v235
        %462 = vmatmul.mubr.f32.gmra.mrb[0].mxu0 %v234
        %v463 = vpop.f32.mrb[0].mxu0
        %v464 = vadd.f32 %v295, %v463
        %v465 = vpop.f32.mrb[0].mxu0
        %466 = vmatprep.mubr.f32.mxu0 %v237
        %467 = vmatmul.mubr.f32.gmra.mrb[0].mxu0 %v236
        %v468 = vpop.f32.mrb[0].mxu0
        %v469 = vadd.f32 %v295, %v468
        %v470 = vpop.f32.mrb[0].mxu0
        %471 = vmatprep.mubr.f32.mxu0 %v239
        %472 = vmatmul.mubr.f32.gmra.mrb[0].mxu0 %v238
        %v473 = vpop.f32.mrb[0].mxu0
        %v474 = vadd.f32 %v295, %v473
        %v475 = vpop.f32.mrb[0].mxu0
        %476 = vmatprep.mubr.f32.mxu0 %v241
        %477 = vmatmul.mubr.f32.gmra.mrb[0].mxu0 %v240
        %v478 = vpop.f32.mrb[0].mxu0
        %v479 = vadd.f32 %v295, %v478
        %v480 = vpop.f32.mrb[0].mxu0
        %481 = vmatprep.mubr.f32.mxu0 %v243
        %482 = vmatmul.mubr.f32.gmra.mrb[0].mxu0 %v242
        %v483 = vpop.f32.mrb[0].mxu0
        %v484 = vadd.f32 %v295, %v483
        %v485 = vpop.f32.mrb[0].mxu0
        %486 = vmatprep.mubr.f32.mxu0 %v245
        %487 = vmatmul.mubr.f32.gmra.mrb[0].mxu0 %v244
        %v488 = vpop.f32.mrb[0].mxu0
        %v489 = vadd.f32 %v295, %v488
        %v490 = vpop.f32.mrb[0].mxu0
        %491 = vmatprep.mubr.f32.mxu0 %v247
        %492 = vmatmul.mubr.f32.gmra.mrb[0].mxu0 %v246
        %v493 = vpop.f32.mrb[0].mxu0
        %v494 = vadd.f32 %v295, %v493
        %v495 = vpop.f32.mrb[0].mxu0
        %496 = vmatprep.mubr.f32.mxu0 %v249
        %497 = vmatmul.mubr.f32.gmra.mrb[0].mxu0 %v248
        %v498 = vpop.f32.mrb[0].mxu0
        %v499 = vadd.f32 %v295, %v498
        %v500 = vpop.f32.mrb[0].mxu0
        %501 = vmatprep.mubr.f32.mxu0 %v251
        %502 = vmatmul.mubr.f32.gmra.mrb[0].mxu0 %v250
        %v503 = vpop.f32.mrb[0].mxu0
        %v504 = vadd.f32 %v295, %v503
        %v505 = vpop.f32.mrb[0].mxu0
        %506 = vmatprep.mubr.f32.mxu0 %v253
        %507 = vmatmul.mubr.f32.gmra.mrb[0].mxu0 %v252
        %v508 = vpop.f32.mrb[0].mxu0
        %v509 = vadd.f32 %v295, %v508
        %v510 = vpop.f32.mrb[0].mxu0
        %511 = vmatprep.mubr.f32.mxu0 %v255
        %512 = vmatmul.mubr.f32.gmra.mrb[0].mxu0 %v254
        %v513 = vpop.f32.mrb[0].mxu0
        %v514 = vadd.f32 %v295, %v513
        %v515 = vpop.f32.mrb[0].mxu0
        %516 = vmatprep.mubr.f32.mxu0 %v257
        %517 = vmatmul.mubr.f32.gmra.mrb[0].mxu0 %v256
        %v518 = vpop.f32.mrb[0].mxu0
        %v519 = vadd.f32 %v295, %v518
        %v520 = vpop.f32.mrb[0].mxu0
        %521 = vdwg.mxu0
        %v522 = vmax.f32 %v364, 0.0
        %v523 = vmax.f32 %v369, 0.0
        %v524 = vmax.f32 %v374, 0.0
        %v525 = vmax.f32 %v379, 0.0
        %v526 = vmax.f32 %v384, 0.0
        %v527 = vmax.f32 %v389, 0.0
        %v528 = vmax.f32 %v394, 0.0
        %v529 = vmax.f32 %v399, 0.0
        %v530 = vmax.f32 %v404, 0.0
        %v531 = vmax.f32 %v409, 0.0
        %v532 = vmax.f32 %v414, 0.0
        %v533 = vmax.f32 %v419, 0.0
        %v534 = vmax.f32 %v424, 0.0
        %v535 = vmax.f32 %v429, 0.0
        %v536 = vmax.f32 %v434, 0.0
        %v537 = vmax.f32 %v439, 0.0
        %v538 = vmax.f32 %v444, 0.0
        %v539 = vmax.f32 %v449, 0.0
        %v540 = vmax.f32 %v454, 0.0
        %v541 = vmax.f32 %v459, 0.0
        %v542 = vmax.f32 %v464, 0.0
        %v543 = vmax.f32 %v469, 0.0
        %v544 = vmax.f32 %v474, 0.0
        %v545 = vmax.f32 %v479, 0.0
        %v546 = vmax.f32 %v484, 0.0
        %v547 = vmax.f32 %v489, 0.0
        %v548 = vmax.f32 %v494, 0.0
        %v549 = vmax.f32 %v499, 0.0
        %v550 = vmax.f32 %v504, 0.0
        %v551 = vmax.f32 %v509, 0.0
        %v552 = vmax.f32 %v514, 0.0
        %v553 = vmax.f32 %v519, 0.0
        %vm554 = vcmask 261120
        %555 = vst.msk [vmem:[%s192] sm:$0xff] %vm554, %v522
        %556 = vst.msk [vmem:[%s192 + $0x8] sm:$0xff] %vm554, %v523
        %557 = vst.msk [vmem:[%s192 + $0x10] sm:$0xff] %vm554, %v524
        %558 = vst.msk [vmem:[%s192 + $0x18] sm:$0xff] %vm554, %v525
        %559 = vst.msk [vmem:[%s192 + $0x20] sm:$0xff] %vm554, %v526
        %560 = vst.msk [vmem:[%s192 + $0x28] sm:$0xff] %vm554, %v527
        %561 = vst.msk [vmem:[%s192 + $0x30] sm:$0xff] %vm554, %v528
        %562 = vst.msk [vmem:[%s192 + $0x38] sm:$0xff] %vm554, %v529
        %563 = vst.msk [vmem:[%s192 + $0x40] sm:$0xff] %vm554, %v530
        %564 = vst.msk [vmem:[%s192 + $0x48] sm:$0xff] %vm554, %v531
        %565 = vst.msk [vmem:[%s192 + $0x50] sm:$0xff] %vm554, %v532
        %566 = vst.msk [vmem:[%s192 + $0x58] sm:$0xff] %vm554, %v533
        %567 = vst.msk [vmem:[%s192 + $0x60] sm:$0xff] %vm554, %v534
        %568 = vst.msk [vmem:[%s192 + $0x68] sm:$0xff] %vm554, %v535
        %569 = vst.msk [vmem:[%s192 + $0x70] sm:$0xff] %vm554, %v536
        %570 = vst.msk [vmem:[%s192 + $0x78] sm:$0xff] %vm554, %v537
        %571 = vst.msk [vmem:[%s192 + $0x80] sm:$0xff] %vm554, %v538
        %572 = vst.msk [vmem:[%s192 + $0x88] sm:$0xff] %vm554, %v539
        %573 = vst.msk [vmem:[%s192 + $0x90] sm:$0xff] %vm554, %v540
        %574 = vst.msk [vmem:[%s192 + $0x98] sm:$0xff] %vm554, %v541
        %575 = vst.msk [vmem:[%s192 + $0xa0] sm:$0xff] %vm554, %v542
        %576 = vst.msk [vmem:[%s192 + $0xa8] sm:$0xff] %vm554, %v543
        %577 = vst.msk [vmem:[%s192 + $0xb0] sm:$0xff] %vm554, %v544
        %578 = vst.msk [vmem:[%s192 + $0xb8] sm:$0xff] %vm554, %v545
        %579 = vst.msk [vmem:[%s192 + $0xc0] sm:$0xff] %vm554, %v546
        %580 = vst.msk [vmem:[%s192 + $0xc8] sm:$0xff] %vm554, %v547
        %581 = vst.msk [vmem:[%s192 + $0xd0] sm:$0xff] %vm554, %v548
        %582 = vst.msk [vmem:[%s192 + $0xd8] sm:$0xff] %vm554, %v549
        %583 = vst.msk [vmem:[%s192 + $0xe0] sm:$0xff] %vm554, %v550
        %584 = vst.msk [vmem:[%s192 + $0xe8] sm:$0xff] %vm554, %v551
        %585 = vst.msk [vmem:[%s192 + $0xf0] sm:$0xff] %vm554, %v552
        %586 = vst.msk [vmem:[%s192 + $0xf8] sm:$0xff] %vm554, %v553
        %s587 = smul.u32 32, %s17
        %p588 = scmp.lt.s32.totalorder %s587, 95
        %s589 = scalar_select %p588, %s587, 95
        %s590 = smul.addr %s589, 8
        %s591 = scalar_lea.vmem %s3, %s590
        // Predicated region
        $region37: #{tpu_custom_call.1} parent=31 // pred_check
          %p592 = pneg %p103
        $region38: #{tpu_custom_call.1} parent=31 // pred_check_branch
          %594 = sbr.rel (%p592) target = $region40
        $region39: #{tpu_custom_call.1} parent=31 // pred_region
          %s595 = smul.u32 32, %s17
        $region40: #{tpu_custom_call.1} parent=31 // pred_fallthru
          _
      $region32: #{tpu_custom_call.1} parent=5 // pred_fallthru
        _
      %p596 = scmp.le.s32.totalorder 2, %s12
      // Predicated region
      $region41: #{tpu_custom_call.1} parent=5 // pred_check
        %p597 = pneg %p596
      $region42: #{tpu_custom_call.1} parent=5 // pred_check_branch
        %599 = sbr.rel (%p597) target = $region44
      $region43: #{tpu_custom_call.1} parent=5 // pred_region
        %s600 = ssub.s32 %s12, 2
        // Predicated region
        $region45: #{tpu_custom_call.1} parent=43 // pred_check
          %p601 = pneg %p109
        $region46: #{tpu_custom_call.1} parent=43 // pred_check_branch
          %603 = sbr.rel (%p601) target = $region48
        $region47: #{tpu_custom_call.1} parent=43 // pred_region
          %s604 = smul.u32 32, %s18
          %p605 = scmp.lt.s32.totalorder %s604, 95
          %s606 = scalar_select %p605, %s604, 95
          %s607 = smul.addr %s606, 8
          %s608 = scalar_lea.vmem %s3, %s607
        $region48: #{tpu_custom_call.1} parent=43 // pred_fallthru
          _
      $region44: #{tpu_custom_call.1} parent=5 // pred_fallthru
        _
    $region6: #{tpu_custom_call.1} parent=1 // loop_footer
      %s16 = sadd.s32 1, %s12
    $region7: #{tpu_custom_call.1} parent=1 // loop_footer_branch
      %11 = sbr.rel target = $region3
    $region8: #{tpu_custom_call.1} parent=1 // loop_exit
      _
    %609 = vsyncpa [#allocation3], 1
    %s610 = scalar_lea.sflag [#allocation3], 1
    %611 = vsyncpa %s610, 1

</llo_original>
